<compile_context>
chip_gen: v5e
topology: v5e:2x2
jax: 0.10.0
libtpu: 0.0.40
codegen_flags: <defaults>
</compile_context>

<pallas_src>
import functools

import jax
import jax.numpy as jnp
from jax import lax
from jax.experimental import pallas as pl
from jax.experimental.pallas import tpu as pltpu

LANE = 128
MAX_TB = 1024  # batch-tile cap; ~1 MiB of double-buffered q block at f32 — far under VMEM limits


def _round_up(x, m):
    return (x + m - 1) // m * m


def _pick_batch_tile(B):
    """Pick the batch tile TB.

    - small B (< 128): round up to a sublane multiple (8), single grid step.
    - large B: multiples of 128, as large as MAX_TB, but capped so that the grid
      has at least 2 steps whenever B spans >= 2 slabs (v7x megacore sharding).
    """
    if B < LANE:
        return _round_up(max(B, 1), 8)
    n_slabs = pl.cdiv(B, LANE)
    if n_slabs == 1:
        return LANE
    tb_slabs = min(MAX_TB // LANE, pl.cdiv(n_slabs, 2))
    return tb_slabs * LANE


def _dqn_mlp_kernel(x_ref, w1_ref, b1_ref, w2_ref, b2_ref, w3_ref, b3_ref,
                    q_ref, *, n_actions):
    # All matmuls in f32 on the MXU (f32 accumulation). MXU slot has huge slack
    # here, so f32 weights cost nothing vs bf16 and match the PyTorch module.
    x = x_ref[...]

    h1 = jnp.dot(x, w1_ref[...], preferred_element_type=jnp.float32) + b1_ref[...]
    h1 = jnp.maximum(h1, 0.0)

    h2 = jnp.dot(h1, w2_ref[...], preferred_element_type=jnp.float32) + b2_ref[...]
    h2 = jnp.maximum(h2, 0.0)

    q = jnp.dot(h2, w3_ref[...], preferred_element_type=jnp.float32) + b3_ref[...]
    # Padded columns (>= n_actions) are exact zeros (zero-padded w3/b3).

    # Fused greedy-action argmax (first-max tie-break, matching torch.argmax).
    # VPU/XLU work is free filler here (MXU / HBM are the binding resources).
    tb, outp = q.shape
    col = lax.broadcasted_iota(jnp.int32, (tb, outp), 1)
    q_masked = jnp.where(col < n_actions, q, -jnp.inf)
    q_max = jnp.max(q_masked, axis=-1, keepdims=True)
    idx = jnp.where(q_masked == q_max, col, outp)
    act = jnp.min(idx, axis=-1, keepdims=True)
    act = jnp.minimum(act, n_actions - 1)          # NaN guard: never emit OOB action
    act_f = act.astype(jnp.float32)                # small ints are exact in f32/bf16

    # Fold the action index into the last (padded) lane -> one lane-dense store,
    # no second narrow output stream.
    out = jnp.where(col == (outp - 1), act_f, q)
    q_ref[...] = out.astype(q_ref.dtype)


@functools.partial(jax.jit, static_argnames=("n_actions", "q_dtype"))
def dqn_forward(x, w1, b1, w2, b2, w3, b3, *, n_actions, q_dtype=jnp.float32):
    """Returns (q_values (B, n_actions), greedy_actions (B,) int32).

    q_dtype=jnp.bfloat16 halves the dominant HBM writeback on v5e/v6e at large
    batch; default f32 keeps parity with the PyTorch module.
    """
    B, S = x.shape
    H1P = w1.shape[1]
    H2P = w2.shape[1]
    OUTP = w3.shape[1]
    assert n_actions <= OUTP - 1, "last padded lane is reserved for the argmax"

    TB = _pick_batch_tile(B)
    B_pad = _round_up(B, TB)
    if B_pad != B:
        x = jnp.pad(x, ((0, B_pad - B), (0, 0)))
    nb = B_pad // TB

    itemsize_q = jnp.dtype(q_dtype).itemsize
    flops = 2 * B_pad * (S * H1P + H1P * H2P + H2P * OUTP)
    bytes_accessed = (4 * B_pad * S                                   # x (f32)
                      + 4 * (S * H1P + H1P * H2P + H2P * OUTP)        # weights (f32)
                      + 4 * (H1P + H2P + OUTP)                        # biases (f32)
                      + itemsize_q * B_pad * OUTP)                    # fused q/action out

    q_pad = pl.pallas_call(
        functools.partial(_dqn_mlp_kernel, n_actions=n_actions),
        out_shape=jax.ShapeDtypeStruct((B_pad, OUTP), q_dtype),
        grid=(nb,),
        in_specs=[
            pl.BlockSpec((TB, S), lambda i: (i, 0)),       # x: blocked over batch
            pl.BlockSpec((S, H1P), lambda i: (0, 0)),      # weights/biases: constant
            pl.BlockSpec((1, H1P), lambda i: (0, 0)),      #   index_map -> VMEM-resident
            pl.BlockSpec((H1P, H2P), lambda i: (0, 0)),
            pl.BlockSpec((1, H2P), lambda i: (0, 0)),
            pl.BlockSpec((H2P, OUTP), lambda i: (0, 0)),
            pl.BlockSpec((1, OUTP), lambda i: (0, 0)),
        ],
        out_specs=pl.BlockSpec((TB, OUTP), lambda i: (i, 0)),  # single lane-dense store
        compiler_params=pltpu.CompilerParams(
            dimension_semantics=("parallel",)),
        cost_estimate=pl.CostEstimate(
            flops=flops, transcendentals=0, bytes_accessed=bytes_accessed),
    )(x, w1, b1, w2, b2, w3, b3)

    q = q_pad[:B, :n_actions].astype(jnp.float32)
    actions = q_pad[:B, OUTP - 1].astype(jnp.int32)
    return q, actions


def init_dqn_params(key, n_states, n_actions, h1=120, h2=84):
    """Deterministic init mimicking torch.nn.Linear (uniform +/- 1/sqrt(fan_in)).

    Hidden dims AND the output dim are zero-padded to 128 lanes; padded
    weights/biases are exact zeros so semantics are unchanged. Everything stays
    f32 (parity with the PyTorch module; compute is nowhere near the bottleneck).
    """
    H1P, H2P, OUTP = 128, 128, 128
    assert h1 <= H1P and h2 <= H2P and n_actions <= OUTP - 1
    ks = jax.random.split(key, 6)

    def linear(kw, kb, fan_in, fan_out):
        bound = 1.0 / (float(fan_in) ** 0.5)
        w = jax.random.uniform(kw, (fan_in, fan_out), jnp.float32, -bound, bound)
        b = jax.random.uniform(kb, (1, fan_out), jnp.float32, -bound, bound)
        return w, b

    w1, b1 = linear(ks[0], ks[1], n_states, h1)
    w2, b2 = linear(ks[2], ks[3], h1, h2)
    w3, b3 = linear(ks[4], ks[5], h2, n_actions)

    w1p = jnp.zeros((n_states, H1P), jnp.float32).at[:, :h1].set(w1)
    b1p = jnp.zeros((1, H1P), jnp.float32).at[:, :h1].set(b1)
    w2p = jnp.zeros((H1P, H2P), jnp.float32).at[:h1, :h2].set(w2)
    b2p = jnp.zeros((1, H2P), jnp.float32).at[:, :h2].set(b2)
    w3p = jnp.zeros((H2P, OUTP), jnp.float32).at[:h2, :n_actions].set(w3)
    b3p = jnp.zeros((1, OUTP), jnp.float32).at[:, :n_actions].set(b3)
    return (w1p, b1p, w2p, b2p, w3p, b3p), (w1, b1, w2, b2, w3, b3)


def reference_forward(x, params_unpadded):
    w1, b1, w2, b2, w3, b3 = params_unpadded
    h1 = jnp.maximum(x @ w1 + b1, 0.0)
    h2 = jnp.maximum(h1 @ w2 + b2, 0.0)
    return h2 @ w3 + b3


if __name__ == "__main__":
    N_STATES, N_ACTIONS = 16, 4

    key = jax.random.PRNGKey(0)
    kx, kp, kx2 = jax.random.split(key, 3)
    padded, unpadded = init_dqn_params(kp, N_STATES, N_ACTIONS)
    w1, b1, w2, b2, w3, b3 = padded

    # Small batch (single grid step).
    B = 8
    x = jax.random.normal(kx, (B, N_STATES), jnp.float32)
    q, actions = dqn_forward(x, w1, b1, w2, b2, w3, b3, n_actions=N_ACTIONS)
    q = jax.block_until_ready(q)
    actions = jax.block_until_ready(actions)

    ref = reference_forward(x, unpadded)
    assert q.shape == (B, N_ACTIONS)
    assert actions.shape == (B,)
    # Tolerance covers TPU default matmul precision differences (pad-width /
    # accumulation-order) between the kernel and the plain-XLA reference.
    assert jnp.allclose(q, ref, atol=2e-2, rtol=2e-2)
    # Fused argmax must match argmax of the kernel's own Q-values exactly.
    assert jnp.array_equal(actions, jnp.argmax(q, axis=-1).astype(jnp.int32))

    # Slightly larger (still small) batch: exercises padding + a >1-step grid.
    B2 = 200
    x2 = jax.random.normal(kx2, (B2, N_STATES), jnp.float32)
    q2, actions2 = dqn_forward(x2, w1, b1, w2, b2, w3, b3, n_actions=N_ACTIONS)
    q2 = jax.block_until_ready(q2)
    actions2 = jax.block_until_ready(actions2)
    ref2 = reference_forward(x2, unpadded)
    assert q2.shape == (B2, N_ACTIONS) and actions2.shape == (B2,)
    assert jnp.allclose(q2, ref2, atol=2e-2, rtol=2e-2)
    assert jnp.array_equal(actions2, jnp.argmax(q2, axis=-1).astype(jnp.int32))

    print("KERNEL_OK")
</pallas_src>

<mosaic_0001>
module attributes {stable_mosaic.version = 11 : i64} {
  func.func @_dqn_mlp_kernel(%arg0: i32, %arg1: memref<8x16xf32, #tpu.memory_space<vmem>>, %arg2: memref<16x128xf32, #tpu.memory_space<vmem>>, %arg3: memref<1x128xf32, #tpu.memory_space<vmem>>, %arg4: memref<128x128xf32, #tpu.memory_space<vmem>>, %arg5: memref<1x128xf32, #tpu.memory_space<vmem>>, %arg6: memref<128x128xf32, #tpu.memory_space<vmem>>, %arg7: memref<1x128xf32, #tpu.memory_space<vmem>>, %arg8: memref<8x128xf32, #tpu.memory_space<vmem>>) attributes {dimension_semantics = [#tpu.dimension_semantics<parallel>], iteration_bounds = array<i64: 1>, scalar_prefetch = 0 : i64, scratch_operands = 0 : i64, tpu.core_type = #tpu.core_type<tc>, window_params = [{transform_indices = @transform_0, window_bounds = array<i64: 8, 16>}, {pipeline_mode = #tpu.pipeline_mode<synchronous>, transform_indices = @transform_1, window_bounds = array<i64: 16, 128>}, {pipeline_mode = #tpu.pipeline_mode<synchronous>, transform_indices = @transform_2, window_bounds = array<i64: 1, 128>}, {pipeline_mode = #tpu.pipeline_mode<synchronous>, transform_indices = @transform_3, window_bounds = array<i64: 128, 128>}, {pipeline_mode = #tpu.pipeline_mode<synchronous>, transform_indices = @transform_4, window_bounds = array<i64: 1, 128>}, {pipeline_mode = #tpu.pipeline_mode<synchronous>, transform_indices = @transform_5, window_bounds = array<i64: 128, 128>}, {pipeline_mode = #tpu.pipeline_mode<synchronous>, transform_indices = @transform_6, window_bounds = array<i64: 1, 128>}, {transform_indices = @transform_7, window_bounds = array<i64: 8, 128>}]} {
    %c0 = arith.constant 0 : index
    %c0_0 = arith.constant 0 : index
    %0 = vector.load %arg1[%c0, %c0_0] : memref<8x16xf32, #tpu.memory_space<vmem>>, vector<8x16xf32>
    %c0_1 = arith.constant 0 : index
    %c0_2 = arith.constant 0 : index
    %1 = vector.load %arg2[%c0_1, %c0_2] : memref<16x128xf32, #tpu.memory_space<vmem>>, vector<16x128xf32>
    %cst = arith.constant dense<0.000000e+00> : vector<8x128xf32>
    %2 = tpu.matmul %0, %1, %cst {dimension_numbers = #tpu.dot_dimension_numbers<[1], [0], [0], [1], [0, 0, 1, 1], [], []>} : vector<8x16xf32>, vector<16x128xf32>, vector<8x128xf32> -> vector<8x128xf32>
    %c0_3 = arith.constant 0 : index
    %c0_4 = arith.constant 0 : index
    %3 = vector.load %arg3[%c0_3, %c0_4] : memref<1x128xf32, #tpu.memory_space<vmem>>, vector<1x128xf32>
    %4 = vector.broadcast %3 : vector<1x128xf32> to vector<8x128xf32>
    %5 = arith.addf %2, %4 : vector<8x128xf32>
    %cst_5 = arith.constant 0.000000e+00 : f32
    %6 = vector.broadcast %cst_5 : f32 to vector<8x128xf32>
    %7 = arith.maximumf %5, %6 : vector<8x128xf32>
    %c0_6 = arith.constant 0 : index
    %c0_7 = arith.constant 0 : index
    %8 = vector.load %arg4[%c0_6, %c0_7] : memref<128x128xf32, #tpu.memory_space<vmem>>, vector<128x128xf32>
    %cst_8 = arith.constant dense<0.000000e+00> : vector<8x128xf32>
    %9 = tpu.matmul %7, %8, %cst_8 {dimension_numbers = #tpu.dot_dimension_numbers<[1], [0], [0], [1], [0, 0, 1, 1], [], []>} : vector<8x128xf32>, vector<128x128xf32>, vector<8x128xf32> -> vector<8x128xf32>
    %c0_9 = arith.constant 0 : index
    %c0_10 = arith.constant 0 : index
    %10 = vector.load %arg5[%c0_9, %c0_10] : memref<1x128xf32, #tpu.memory_space<vmem>>, vector<1x128xf32>
    %11 = vector.broadcast %10 : vector<1x128xf32> to vector<8x128xf32>
    %12 = arith.addf %9, %11 : vector<8x128xf32>
    %cst_11 = arith.constant 0.000000e+00 : f32
    %13 = vector.broadcast %cst_11 : f32 to vector<8x128xf32>
    %14 = arith.maximumf %12, %13 : vector<8x128xf32>
    %c0_12 = arith.constant 0 : index
    %c0_13 = arith.constant 0 : index
    %15 = vector.load %arg6[%c0_12, %c0_13] : memref<128x128xf32, #tpu.memory_space<vmem>>, vector<128x128xf32>
    %cst_14 = arith.constant dense<0.000000e+00> : vector<8x128xf32>
    %16 = tpu.matmul %14, %15, %cst_14 {dimension_numbers = #tpu.dot_dimension_numbers<[1], [0], [0], [1], [0, 0, 1, 1], [], []>} : vector<8x128xf32>, vector<128x128xf32>, vector<8x128xf32> -> vector<8x128xf32>
    %c0_15 = arith.constant 0 : index
    %c0_16 = arith.constant 0 : index
    %17 = vector.load %arg7[%c0_15, %c0_16] : memref<1x128xf32, #tpu.memory_space<vmem>>, vector<1x128xf32>
    %18 = vector.broadcast %17 : vector<1x128xf32> to vector<8x128xf32>
    %19 = arith.addf %16, %18 : vector<8x128xf32>
    %20 = tpu.iota {dimensions = array<i32: 1>} : vector<8x128xi32>
    %c4_i32 = arith.constant 4 : i32
    %21 = vector.broadcast %c4_i32 : i32 to vector<8x128xi32>
    %22 = arith.cmpi slt, %20, %21 : vector<8x128xi32>
    %cst_17 = arith.constant 0xFF800000 : f32
    %23 = vector.broadcast %cst_17 : f32 to vector<8x128xf32>
    %24 = arith.select %22, %19, %23 : vector<8x128xi1>, vector<8x128xf32>
    %cst_18 = arith.constant dense<0xFF800000> : vector<8xf32>
    %25 = vector.multi_reduction <maximumf>, %24, %cst_18 [1] : vector<8x128xf32> to vector<8xf32>
    %26 = vector.shape_cast %25 : vector<8xf32> to vector<8x1xf32>
    %27 = vector.broadcast %26 : vector<8x1xf32> to vector<8x128xf32>
    %28 = arith.cmpf oeq, %24, %27 : vector<8x128xf32>
    %c128_i32 = arith.constant 128 : i32
    %29 = vector.broadcast %c128_i32 : i32 to vector<8x128xi32>
    %30 = arith.select %28, %20, %29 : vector<8x128xi1>, vector<8x128xi32>
    %cst_19 = arith.constant dense<2147483647> : vector<8xi32>
    %31 = vector.multi_reduction <minsi>, %30, %cst_19 [1] : vector<8x128xi32> to vector<8xi32>
    %32 = vector.shape_cast %31 : vector<8xi32> to vector<8x1xi32>
    %c3_i32 = arith.constant 3 : i32
    %33 = vector.broadcast %c3_i32 : i32 to vector<8x1xi32>
    %34 = arith.minsi %32, %33 : vector<8x1xi32>
    %35 = arith.sitofp %34 : vector<8x1xi32> to vector<8x1xf32>
    %c127_i32 = arith.constant 127 : i32
    %36 = vector.broadcast %c127_i32 : i32 to vector<8x128xi32>
    %37 = arith.cmpi eq, %20, %36 : vector<8x128xi32>
    %38 = vector.shape_cast %35 : vector<8x1xf32> to vector<8x1xf32>
    %39 = vector.broadcast %38 : vector<8x1xf32> to vector<8x128xf32>
    %40 = arith.select %37, %39, %19 : vector<8x128xi1>, vector<8x128xf32>
    %c0_20 = arith.constant 0 : index
    %c0_21 = arith.constant 0 : index
    %41 = vector.load %arg8[%c0_20, %c0_21] : memref<8x128xf32, #tpu.memory_space<vmem>>, vector<8x128xf32>
    tpu.vector_store %arg8[%c0_20, %c0_21], %40 {strides = array<i32>} : memref<8x128xf32, #tpu.memory_space<vmem>>, vector<8x128xf32>,
    return
  }
  func.func @transform_0(%arg0: i32) -> (i32, i32) {
    %c0_i32 = arith.constant 0 : i32
    %c0_i32_0 = arith.constant 0 : i32
    return %arg0, %c0_i32 : i32, i32
  }
  func.func @transform_1(%arg0: i32) -> (i32, i32) {
    %c0_i32 = arith.constant 0 : i32
    %c0_i32_0 = arith.constant 0 : i32
    %c0_i32_1 = arith.constant 0 : i32
    return %c0_i32, %c0_i32_0 : i32, i32
  }
  func.func @transform_2(%arg0: i32) -> (i32, i32) {
    %c0_i32 = arith.constant 0 : i32
    %c0_i32_0 = arith.constant 0 : i32
    %c0_i32_1 = arith.constant 0 : i32
    return %c0_i32, %c0_i32_0 : i32, i32
  }
  func.func @transform_3(%arg0: i32) -> (i32, i32) {
    %c0_i32 = arith.constant 0 : i32
    %c0_i32_0 = arith.constant 0 : i32
    %c0_i32_1 = arith.constant 0 : i32
    return %c0_i32, %c0_i32_0 : i32, i32
  }
  func.func @transform_4(%arg0: i32) -> (i32, i32) {
    %c0_i32 = arith.constant 0 : i32
    %c0_i32_0 = arith.constant 0 : i32
    %c0_i32_1 = arith.constant 0 : i32
    return %c0_i32, %c0_i32_0 : i32, i32
  }
  func.func @transform_5(%arg0: i32) -> (i32, i32) {
    %c0_i32 = arith.constant 0 : i32
    %c0_i32_0 = arith.constant 0 : i32
    %c0_i32_1 = arith.constant 0 : i32
    return %c0_i32, %c0_i32_0 : i32, i32
  }
  func.func @transform_6(%arg0: i32) -> (i32, i32) {
    %c0_i32 = arith.constant 0 : i32
    %c0_i32_0 = arith.constant 0 : i32
    %c0_i32_1 = arith.constant 0 : i32
    return %c0_i32, %c0_i32_0 : i32, i32
  }
  func.func @transform_7(%arg0: i32) -> (i32, i32) {
    %c0_i32 = arith.constant 0 : i32
    %c0_i32_0 = arith.constant 0 : i32
    return %arg0, %c0_i32 : i32, i32
  }
}

</mosaic_0001>

<llo_original>
// kernel: dqn_forward.1
$region0: #{dqn_forward.1}
  #allocation0 [shape = 'u32[]', space=smem, size = 0x4, offset = 0x4, fixed_abs, tag = 'smem constant byte address 0x4 - core index']
  #allocation1 [shape = 'u32[72,128]{1,0:T(1,128)}', space=vmem, size = 0x9000, scoped, tag = 'internal scratch']
  %s0 = inlined_call_operand.hbm [shape: f32[8,16], index: 0, kind: input, shape index: {}]
  %s1 = inlined_call_operand.hbm [shape: f32[16,128], index: 1, kind: input, shape index: {}]
  %s2 = inlined_call_operand.vmem [shape: f32[1,128], index: 2, kind: input, shape index: {}]
  %s3 = inlined_call_operand.hbm [shape: f32[128,128], index: 3, kind: input, shape index: {}]
  %s4 = inlined_call_operand.vmem [shape: f32[1,128], index: 4, kind: input, shape index: {}]
  %s5 = inlined_call_operand.hbm [shape: f32[128,128], index: 5, kind: input, shape index: {}]
  %s6 = inlined_call_operand.vmem [shape: f32[1,128], index: 6, kind: input, shape index: {}]
  %s7 = inlined_call_operand.vmem [shape: f32[8,128], index: 7, kind: output, shape index: {}]
  %s8 = sld [smem:[#allocation0]]
  $region54: #{dqn_forward.1} parent=0
    _
  %s10 = ssub.s32 1, %s8
  %s11 = scalar_select 0, %s10, %s8
  $region1: #{dqn_forward.1} parent=0
    #allocation2 [shape = 'u8[4096]{0}', space=vmem, size = 0x1000, scoped, tag = 'input window, operand 0, single buffered']
    #allocation3 [shape = 's32[1]{0}', space=sflag, size = 0x4, scoped, tag = 'scoped memory for dqn_forward.1']
    #allocation4 [shape = 'u8[8192]{0}', space=vmem, size = 0x2000, scoped, tag = 'input window, operand 1, single buffered']
    #allocation5 [shape = 's32[1]{0}', space=sflag, size = 0x4, scoped, tag = 'scoped memory for dqn_forward.1']
    #allocation6 [shape = 'u8[65536]{0}', space=vmem, size = 0x10000, scoped, tag = 'input window, operand 3, single buffered']
    #allocation7 [shape = 'u8[65536]{0}', space=vmem, size = 0x10000, scoped, tag = 'input window, operand 5, single buffered']
    #allocation8 [shape = 's32[1]{0}', space=sflag, size = 0x4, scoped, tag = 'scoped memory for dqn_forward.1']
    %12 = vsyncpa [#allocation3], 0
    %13 = vsyncpa [#allocation5], 0
    %14 = vsyncpa [#allocation8], 0
    // Predicated region
    $region2: #{dqn_forward.1} parent=1 // pred_check
      _
    $region3: #{dqn_forward.1} parent=1 // pred_check_branch
      %16 = sbr.rel (0) target = $region5
    $region4: #{dqn_forward.1} parent=1 // pred_region
      %18 = vsyncadd [#allocation3], 0
      %s20 = sshll.u32 %s0, 4
      %s21 = int_to_ptr.hbm [resolvable:$true] %s20
      %s22 = sshll.u32 [#allocation2], 4
      %s23 = int_to_ptr.vmem [resolvable:$true] %s22
      %25 = dma.hbm_to_vmem [thread:$0]  %s21, 128, %s23, [#allocation3]
    $region5: #{dqn_forward.1} parent=1 // pred_fallthru
      _
    // Predicated region
    $region6: #{dqn_forward.1} parent=1 // pred_check
      _
    $region7: #{dqn_forward.1} parent=1 // pred_check_branch
      %27 = sbr.rel (0) target = $region9
    $region8: #{dqn_forward.1} parent=1 // pred_region
      %29 = vsyncadd [#allocation5], 0
      %s30 = sshll.u32 %s1, 4
      %s31 = int_to_ptr.hbm [resolvable:$true] %s30
      %s32 = sshll.u32 [#allocation4], 4
      %s33 = int_to_ptr.vmem [resolvable:$true] %s32
      %38 = dma.hbm_to_vmem [thread:$0]  %s31, 256, %s33, [#allocation5], 128, 128, 8
    $region9: #{dqn_forward.1} parent=1 // pred_fallthru
      _
    // Predicated region
    $region10: #{dqn_forward.1} parent=1 // pred_check
      _
    $region11: #{dqn_forward.1} parent=1 // pred_check_branch
      %40 = sbr.rel (0) target = $region13
    $region12: #{dqn_forward.1} parent=1 // pred_region
      _
    $region13: #{dqn_forward.1} parent=1 // pred_fallthru
      _
    // Predicated region
    $region14: #{dqn_forward.1} parent=1 // pred_check
      _
    $region15: #{dqn_forward.1} parent=1 // pred_check_branch
      %42 = sbr.rel (0) target = $region17
    $region16: #{dqn_forward.1} parent=1 // pred_region
      %44 = vsyncadd [#allocation5], 0
      %s45 = sshll.u32 %s3, 4
      %s46 = int_to_ptr.hbm [resolvable:$true] %s45
      %s47 = sshll.u32 [#allocation6], 4
      %s48 = int_to_ptr.vmem [resolvable:$true] %s47
      %53 = dma.hbm_to_vmem [thread:$0]  %s46, 2048, %s48, [#allocation5], 128, 128, 8
    $region17: #{dqn_forward.1} parent=1 // pred_fallthru
      _
    // Predicated region
    $region18: #{dqn_forward.1} parent=1 // pred_check
      _
    $region19: #{dqn_forward.1} parent=1 // pred_check_branch
      %55 = sbr.rel (0) target = $region21
    $region20: #{dqn_forward.1} parent=1 // pred_region
      _
    $region21: #{dqn_forward.1} parent=1 // pred_fallthru
      _
    // Predicated region
    $region22: #{dqn_forward.1} parent=1 // pred_check
      _
    $region23: #{dqn_forward.1} parent=1 // pred_check_branch
      %57 = sbr.rel (0) target = $region25
    $region24: #{dqn_forward.1} parent=1 // pred_region
      %59 = vsyncadd [#allocation8], 0
      %s60 = sshll.u32 %s5, 4
      %s61 = int_to_ptr.hbm [resolvable:$true] %s60
      %s62 = sshll.u32 [#allocation7], 4
      %s63 = int_to_ptr.vmem [resolvable:$true] %s62
      %68 = dma.hbm_to_vmem [thread:$0]  %s61, 2048, %s63, [#allocation8], 128, 128, 8
    $region25: #{dqn_forward.1} parent=1 // pred_fallthru
      _
    // Predicated region
    $region26: #{dqn_forward.1} parent=1 // pred_check
      _
    $region27: #{dqn_forward.1} parent=1 // pred_check_branch
      %70 = sbr.rel (0) target = $region29
    $region28: #{dqn_forward.1} parent=1 // pred_region
      _
    $region29: #{dqn_forward.1} parent=1 // pred_fallthru
      _
    // Predicated region
    $region30: #{dqn_forward.1} parent=1 // pred_check
      _
    $region31: #{dqn_forward.1} parent=1 // pred_check_branch
      %72 = sbr.rel (0) target = $region33
    $region32: #{dqn_forward.1} parent=1 // pred_region
      %74 = dma.done [#allocation3], 128
    $region33: #{dqn_forward.1} parent=1 // pred_fallthru
      _
    // Predicated region
    $region34: #{dqn_forward.1} parent=1 // pred_check
      _
    $region35: #{dqn_forward.1} parent=1 // pred_check_branch
      %76 = sbr.rel (0) target = $region37
    $region36: #{dqn_forward.1} parent=1 // pred_region
      %78 = dma.done [#allocation5], 256
    $region37: #{dqn_forward.1} parent=1 // pred_fallthru
      _
    // Predicated region
    $region38: #{dqn_forward.1} parent=1 // pred_check
      _
    $region39: #{dqn_forward.1} parent=1 // pred_check_branch
      %80 = sbr.rel (0) target = $region41
    $region40: #{dqn_forward.1} parent=1 // pred_region
      %82 = dma.done [#allocation5], 2048
    $region41: #{dqn_forward.1} parent=1 // pred_fallthru
      _
    // Predicated region
    $region42: #{dqn_forward.1} parent=1 // pred_check
      _
    $region43: #{dqn_forward.1} parent=1 // pred_check_branch
      %84 = sbr.rel (0) target = $region45
    $region44: #{dqn_forward.1} parent=1 // pred_region
      %86 = dma.done [#allocation8], 2048
    $region45: #{dqn_forward.1} parent=1 // pred_fallthru
      _
    %v87 = vld [vmem:[#allocation2] sm:$0xff]
    %v88 = vld [vmem:[#allocation4] sm:$0xff]
    %v89 = vld [vmem:[#allocation4 + $0x8] sm:$0xff]
    %v90 = vld [vmem:[%s2] sm:$0x1]
    %v92 = vperm.slane %v90, 0
    %vm94 = vcmask 130048
    %v96 = vsel %vm94, %v87, 0
    %98 = vmatpush.msra.mxu0 0.0
    %99 = vmatpush.msra.mxu0 0.0
    %100 = vmatpush.msra.mxu0 0.0
    %101 = vmatpush.msra.mxu0 0.0
    %102 = vmatpush.msra.mxu0 0.0
    %103 = vmatpush.msra.mxu0 0.0
    %104 = vmatpush.msra.mxu0 0.0
    %105 = vmatpush.msra.mxu0 0.0
    %106 = vmatpush.msra.mxu0 0.0
    %107 = vmatpush.msra.mxu0 0.0
    %108 = vmatpush.msra.mxu0 0.0
    %109 = vmatpush.msra.mxu0 0.0
    %110 = vmatpush.msra.mxu0 0.0
    %111 = vmatpush.msra.mxu0 0.0
    %112 = vmatpush.msra.mxu0 %v89
    %113 = vmatpush.msra.mxu0 %v88
    %114 = vmatmul.f32.gmra.mxu0 %v96
    %v115 = vpop.f32.mrf.mxu0
    %v116 = vadd.f32 %v92, %v115
    %117 = vdwg.mxu0
    %v118 = vmax.f32 %v116, 0.0
    %v119 = vld [vmem:[#allocation6] sm:$0xff]
    %v120 = vld [vmem:[#allocation6 + $0x8] sm:$0xff]
    %v121 = vld [vmem:[#allocation6 + $0x10] sm:$0xff]
    %v122 = vld [vmem:[#allocation6 + $0x18] sm:$0xff]
    %v123 = vld [vmem:[#allocation6 + $0x20] sm:$0xff]
    %v124 = vld [vmem:[#allocation6 + $0x28] sm:$0xff]
    %v125 = vld [vmem:[#allocation6 + $0x30] sm:$0xff]
    %v126 = vld [vmem:[#allocation6 + $0x38] sm:$0xff]
    %v127 = vld [vmem:[#allocation6 + $0x40] sm:$0xff]
    %v128 = vld [vmem:[#allocation6 + $0x48] sm:$0xff]
    %v129 = vld [vmem:[#allocation6 + $0x50] sm:$0xff]
    %v130 = vld [vmem:[#allocation6 + $0x58] sm:$0xff]
    %v131 = vld [vmem:[#allocation6 + $0x60] sm:$0xff]
    %v132 = vld [vmem:[#allocation6 + $0x68] sm:$0xff]
    %v133 = vld [vmem:[#allocation6 + $0x70] sm:$0xff]
    %v134 = vld [vmem:[#allocation6 + $0x78] sm:$0xff]
    %v135 = vld [vmem:[%s4] sm:$0x1]
    %v137 = vperm.slane %v135, 0
    %139 = vmatpush.msra.mxu0 %v134
    %140 = vmatpush.msra.mxu0 %v133
    %141 = vmatpush.msra.mxu0 %v132
    %142 = vmatpush.msra.mxu0 %v131
    %143 = vmatpush.msra.mxu0 %v130
    %144 = vmatpush.msra.mxu0 %v129
    %145 = vmatpush.msra.mxu0 %v128
    %146 = vmatpush.msra.mxu0 %v127
    %147 = vmatpush.msra.mxu0 %v126
    %148 = vmatpush.msra.mxu0 %v125
    %149 = vmatpush.msra.mxu0 %v124
    %150 = vmatpush.msra.mxu0 %v123
    %151 = vmatpush.msra.mxu0 %v122
    %152 = vmatpush.msra.mxu0 %v121
    %153 = vmatpush.msra.mxu0 %v120
    %154 = vmatpush.msra.mxu0 %v119
    %155 = vmatmul.f32.gmra.mxu0 %v118
    %v156 = vpop.f32.mrf.mxu0
    %v157 = vadd.f32 %v137, %v156
    %158 = vdwg.mxu0
    %v159 = vmax.f32 %v157, 0.0
    %v160 = vld [vmem:[#allocation7] sm:$0xff]
    %v161 = vld [vmem:[#allocation7 + $0x8] sm:$0xff]
    %v162 = vld [vmem:[#allocation7 + $0x10] sm:$0xff]
    %v163 = vld [vmem:[#allocation7 + $0x18] sm:$0xff]
    %v164 = vld [vmem:[#allocation7 + $0x20] sm:$0xff]
    %v165 = vld [vmem:[#allocation7 + $0x28] sm:$0xff]
    %v166 = vld [vmem:[#allocation7 + $0x30] sm:$0xff]
    %v167 = vld [vmem:[#allocation7 + $0x38] sm:$0xff]
    %v168 = vld [vmem:[#allocation7 + $0x40] sm:$0xff]
    %v169 = vld [vmem:[#allocation7 + $0x48] sm:$0xff]
    %v170 = vld [vmem:[#allocation7 + $0x50] sm:$0xff]
    %v171 = vld [vmem:[#allocation7 + $0x58] sm:$0xff]
    %v172 = vld [vmem:[#allocation7 + $0x60] sm:$0xff]
    %v173 = vld [vmem:[#allocation7 + $0x68] sm:$0xff]
    %v174 = vld [vmem:[#allocation7 + $0x70] sm:$0xff]
    %v175 = vld [vmem:[#allocation7 + $0x78] sm:$0xff]
    %v176 = vld [vmem:[%s6] sm:$0x1]
    %v178 = vperm.slane %v176, 0
    %180 = vmatpush.msra.mxu0 %v175
    %181 = vmatpush.msra.mxu0 %v174
    %182 = vmatpush.msra.mxu0 %v173
    %183 = vmatpush.msra.mxu0 %v172
    %184 = vmatpush.msra.mxu0 %v171
    %185 = vmatpush.msra.mxu0 %v170
    %186 = vmatpush.msra.mxu0 %v169
    %187 = vmatpush.msra.mxu0 %v168
    %188 = vmatpush.msra.mxu0 %v167
    %189 = vmatpush.msra.mxu0 %v166
    %190 = vmatpush.msra.mxu0 %v165
    %191 = vmatpush.msra.mxu0 %v164
    %192 = vmatpush.msra.mxu0 %v163
    %193 = vmatpush.msra.mxu0 %v162
    %194 = vmatpush.msra.mxu0 %v161
    %195 = vmatpush.msra.mxu0 %v160
    %196 = vmatmul.f32.gmra.mxu0 %v159
    %v197 = vpop.f32.mrf.mxu0
    %v198 = vadd.f32 %v178, %v197
    %199 = vdwg.mxu0
    %v200 = vlaneseq
    %v201 = vand.u32 %v200, 127
    %vm202 = vcmp.lt.s32.totalorder %v201, 4
    %v203 = vsel %vm202, %v198, -inf
    %204 = vmax.xlane.f32.xlu0 %v203
    %v205 = vpop.xlane.xlu0 %204
    %vm206 = vcmp.eq.f32.partialorder %v203, %v205
    %v207 = vsel %vm206, %v201, 128
    %v208 = vand.u32 %v207, 65535
    %v209 = vshra.s32 %v207, 16
    %v210 = vcvt.s32.f32 %v208
    %v211 = vcvt.s32.f32 %v209
    %212 = vmin.xlane.f32.xlu0 %v211
    %v213 = vpop.xlane.xlu0 %212
    %vm214 = vcmp.eq.f32.partialorder %v211, %v213
    %v215 = vsel %vm214, %v210, inf
    %216 = vmin.xlane.f32.xlu0 %v215
    %v217 = vpop.xlane.xlu0 %216
    %v218 = vcvt.f32.s32 %v217
    %v219 = vcvt.f32.s32 %v213
    %v220 = vshll.u32 %v219, 16
    %v221 = vadd.s32 %v220, %v218
    %vm222 = vcmp.lt.s32.totalorder %v221, 3
    %v223 = vsel %vm222, %v221, 3
    %v224 = vcvt.s32.f32 %v223
    %vm225 = vcmp.eq.s32.totalorder %v201, 127
    %v226 = vsel %vm225, %v224, %v198
    %227 = vst [vmem:[%s7] sm:$0xff] %v226
    // Predicated region
    $region46: #{dqn_forward.1} parent=1 // pred_check
      _
    $region47: #{dqn_forward.1} parent=1 // pred_check_branch
      %229 = sbr.rel (0) target = $region49
    $region48: #{dqn_forward.1} parent=1 // pred_region
      _
    $region49: #{dqn_forward.1} parent=1 // pred_fallthru
      _
    // Predicated region
    $region50: #{dqn_forward.1} parent=1 // pred_check
      _
    $region51: #{dqn_forward.1} parent=1 // pred_check_branch
      %231 = sbr.rel (0) target = $region53
    $region52: #{dqn_forward.1} parent=1 // pred_region
      _
    $region53: #{dqn_forward.1} parent=1 // pred_fallthru
      _
    %232 = vsyncpa [#allocation3], 1
    %233 = vsyncpa [#allocation5], 1
    %234 = vsyncpa [#allocation8], 1

</llo_original>
